<compile_context>
chip_gen: v6e
topology: v6e:2x2x1
jax: 0.10.0
libtpu: 0.0.40
codegen_flags: <defaults>
</compile_context>

<pallas_src>
import functools

import jax
import jax.numpy as jnp
from jax.experimental import pallas as pl
from jax.experimental.pallas import tpu as pltpu

_EPS = 1e-5  # nn.BatchNorm2d default eps


# ----------------------------------------------------------------------------
# Fused Pallas kernel
# ----------------------------------------------------------------------------
def _cnn1_fused_kernel(x_ref, row_ref, col_ref, gamma_ref, beta_ref, o_ref,
                       *, K, pad, H, W, Ho, Wo, inv_m):
    """All-ones conv + train-mode BatchNorm + ReLU + channel broadcast.

    x_ref     : (N, C, H*W)  f32  full input, spatially flattened (lane-dense).
    row_ref   : (1, H*W)     i32  row index of each flat position.
    col_ref   : (1, H*W)     i32  column index of each flat position.
    gamma_ref : (Cb, 1)      f32  BatchNorm2d.weight chunk for this grid step.
    beta_ref  : (Cb, 1)      f32  BatchNorm2d.bias   chunk for this grid step.
    o_ref     : (N, Cb, H*W) f32  output chunk (positions with i >= Ho or
                                  j >= Wo hold unused values; the wrapper slices
                                  them off when the conv is not "same"-sized).
    """
    HW = x_ref.shape[2]

    # (1) all-ones conv over input channels == plane sum (lane-dense tree reduce).
    ch = jnp.sum(x_ref[...], axis=1)                      # (N, H*W)
    row = row_ref[...]                                    # (1, H*W)
    col = col_ref[...]                                    # (1, H*W)

    # (2) all-ones KxK, stride-1, zero-padded box-sum, separable, in flat lane
    #     space.  A spatial shift (dy, dx) is a flat lane shift by dy*W + dx and
    #     the zero padding becomes a boundary mask; lane wrap-around can only
    #     land on masked positions, so a two-slice rotation is sufficient.
    def rot(a, d):
        # rot(a, d)[..., q] == a[..., (q + d) % HW]
        dd = d % HW
        if dd == 0:
            return a
        return jnp.concatenate([a[:, dd:], a[:, :dd]], axis=1)

    v = ch                                                # dy == 0 term
    for ky in range(K):                                   # vertical pass
        dy = ky - pad
        if dy == 0:
            continue
        t = rot(ch, dy * W)
        if dy > 0:
            t = jnp.where(row < H - dy, t, 0.0)
        else:
            t = jnp.where(row >= -dy, t, 0.0)
        v = v + t

    s = v                                                 # dx == 0 term
    for kx in range(K):                                   # horizontal pass
        dx = kx - pad
        if dx == 0:
            continue
        t = rot(v, dx)
        if dx > 0:
            t = jnp.where(col < W - dx, t, 0.0)
        else:
            t = jnp.where(col >= -dx, t, 0.0)
        s = s + t

    # (3) training-mode batch statistics.  Every pre-BN channel is identical, so
    #     the per-channel stats collapse to the scalar stats of `s` over the real
    #     output positions.  Two-pass mean/variance (biased) for stability.
    if (Ho == H) and (Wo == W):
        mean = jnp.sum(s, keepdims=True) * inv_m          # (1, 1)
        diff = s - mean
    else:
        real = (row < Ho) & (col < Wo)                    # (1, H*W)
        mean = jnp.sum(jnp.where(real, s, 0.0), keepdims=True) * inv_m
        diff = jnp.where(real, s - mean, 0.0)
    var = jnp.sum(diff * diff, keepdims=True) * inv_m     # (1, 1)
    rstd = jax.lax.rsqrt(var + _EPS)                      # EUP

    # (4) fused affine + ReLU + channel broadcast: one lane-dense slab store.
    scale = gamma_ref[...] * rstd                         # (Cb, 1)
    shift = beta_ref[...] - mean * scale                  # (Cb, 1)
    o_ref[...] = jnp.maximum(s[:, None, :] * scale[None] + shift[None], 0.0)


# ----------------------------------------------------------------------------
# Wrapper
# ----------------------------------------------------------------------------
def cnn1_forward(params, x, *, map_size, pad):
    """CNN1.forward for NCHW `x`: conv(ones KxK, stride 1, padding=pad) ->
    BatchNorm2d (training batch stats) -> ReLU, as one fused Pallas call."""
    K = int(map_size)
    pad = int(pad)
    x = x.astype(jnp.float32)

    if 2 * pad > K - 1:
        # Over-padding (pad > (K-1)/2) is never used by M2SNet's CNN1(64,3,1) /
        # CNN1(64,5,2); fold the excess into an explicit spatial pad so the same
        # fused kernel applies.
        # TODO(synk): fold this rare case into the kernel boundary masks too.
        x = jnp.pad(x, ((0, 0), (0, 0), (pad, pad), (pad, pad)))
        pad = 0

    N, C, H, W = x.shape
    Ho = H + 2 * pad - K + 1
    Wo = W + 2 * pad - K + 1
    assert Ho >= 1 and Wo >= 1, "conv output would be empty"
    HW = H * W

    # Flat-index -> (row, col) maps: tiny constants, DMA'd to VMEM once.
    flat = jnp.arange(HW, dtype=jnp.int32)
    row_map = (flat // W).reshape(1, HW)
    col_map = (flat % W).reshape(1, HW)

    gamma = params["gamma"].reshape(C, 1).astype(jnp.float32)
    beta = params["beta"].reshape(C, 1).astype(jnp.float32)
    xf = x.reshape(N, C, HW)                          # free row-major view

    # Split the channel-broadcast epilogue into two chunks so the grid has a
    # "parallel" axis for the v7x megacore; harmless on single-TC v5e / v6e.
    cb = C // 2 if (C % 16 == 0) else C
    grid = (C // cb,)

    kernel = functools.partial(
        _cnn1_fused_kernel,
        K=K, pad=pad, H=H, W=W, Ho=Ho, Wo=Wo, inv_m=1.0 / float(N * Ho * Wo))

    out_flat = pl.pallas_call(
        kernel,
        grid=grid,
        in_specs=[
            pl.BlockSpec((N, C, HW), lambda j: (0, 0, 0)),   # x (resident)
            pl.BlockSpec((1, HW), lambda j: (0, 0)),         # row map
            pl.BlockSpec((1, HW), lambda j: (0, 0)),         # col map
            pl.BlockSpec((cb, 1), lambda j: (j, 0)),         # gamma chunk
            pl.BlockSpec((cb, 1), lambda j: (j, 0)),         # beta chunk
        ],
        out_specs=pl.BlockSpec((N, cb, HW), lambda j: (0, j, 0)),
        out_shape=jax.ShapeDtypeStruct((N, C, HW), jnp.float32),
        compiler_params=pltpu.CompilerParams(
            dimension_semantics=("parallel",)),
    )(xf, row_map, col_map, gamma, beta)

    out = out_flat.reshape(N, C, H, W)                # free row-major view
    if (Ho, Wo) != (H, W):
        out = out[:, :, :Ho, :Wo]                     # drop the masked-off margin
    return out


# ----------------------------------------------------------------------------
# Self-test
# ----------------------------------------------------------------------------
if __name__ == "__main__":
    key = jax.random.PRNGKey(0)
    # M2SNet instantiates CNN1(64, 3, 1) (`conv_3`) and CNN1(64, 5, 2) (`conv_5`);
    # keep channel=64 at a small 16x16 spatial size, batch=2.
    N, C, H, W = 2, 64, 16, 16
    x = jax.random.normal(key, (N, C, H, W), jnp.float32)
    params = dict(gamma=jnp.ones((C,), jnp.float32),   # BatchNorm2d.weight init
                  beta=jnp.zeros((C,), jnp.float32))   # BatchNorm2d.bias init

    # Pure-JAX reference: conv2d(ones weight, zero bias) -> train-mode BN -> ReLU.
    def ref_fwd(x, gamma, beta, K, pad):
        w = jnp.ones((C, C, K, K), jnp.float32)
        conv = jax.lax.conv_general_dilated(
            x, w, window_strides=(1, 1), padding=[(pad, pad), (pad, pad)],
            dimension_numbers=("NCHW", "OIHW", "NCHW"),
            precision=jax.lax.Precision.HIGHEST)
        mean = conv.mean(axis=(0, 2, 3), keepdims=True)
        var = ((conv - mean) ** 2).mean(axis=(0, 2, 3), keepdims=True)
        y = (conv - mean) * jax.lax.rsqrt(var + _EPS)
        y = y * gamma.reshape(1, C, 1, 1) + beta.reshape(1, C, 1, 1)
        return jnp.maximum(y, 0.0)

    # The two configs used by M2SNet, plus one non-"same" config to exercise the
    # masked-statistics / output-margin path.
    for K, pad in ((3, 1), (5, 2), (3, 0)):
        fwd = jax.jit(functools.partial(cnn1_forward, map_size=K, pad=pad))
        out = jax.block_until_ready(fwd(params, x))
        ref = ref_fwd(x, params["gamma"], params["beta"], K, pad)
        assert out.shape == ref.shape, (K, pad, out.shape, ref.shape)
        assert bool(jnp.isfinite(out).all()), (K, pad)
        err = float(jnp.abs(out - ref).max())
        assert jnp.allclose(out, ref, atol=2e-3, rtol=2e-3), (K, pad, err)

    print("KERNEL_OK")
</pallas_src>

<mosaic_0001>
module attributes {stable_mosaic.version = 11 : i64} {
  func.func @_cnn1_fused_kernel(%arg0: i32, %arg1: memref<2x64x256xf32, #tpu.memory_space<vmem>>, %arg2: memref<1x256xi32, #tpu.memory_space<vmem>>, %arg3: memref<1x256xi32, #tpu.memory_space<vmem>>, %arg4: memref<32x1xf32, #tpu.memory_space<vmem>>, %arg5: memref<32x1xf32, #tpu.memory_space<vmem>>, %arg6: memref<2x32x256xf32, #tpu.memory_space<vmem>>) attributes {dimension_semantics = [#tpu.dimension_semantics<parallel>], iteration_bounds = array<i64: 2>, scalar_prefetch = 0 : i64, scratch_operands = 0 : i64, tpu.core_type = #tpu.core_type<tc>, window_params = [{pipeline_mode = #tpu.pipeline_mode<synchronous>, transform_indices = @transform_0, window_bounds = array<i64: 2, 64, 256>}, {pipeline_mode = #tpu.pipeline_mode<synchronous>, transform_indices = @transform_1, window_bounds = array<i64: 1, 256>}, {pipeline_mode = #tpu.pipeline_mode<synchronous>, transform_indices = @transform_2, window_bounds = array<i64: 1, 256>}, {transform_indices = @transform_3, window_bounds = array<i64: 32, 1>}, {transform_indices = @transform_4, window_bounds = array<i64: 32, 1>}, {transform_indices = @transform_5, window_bounds = array<i64: 2, 32, 256>}]} {
    %c0 = arith.constant 0 : index
    %c0_0 = arith.constant 0 : index
    %c0_1 = arith.constant 0 : index
    %0 = vector.load %arg1[%c0, %c0_0, %c0_1] : memref<2x64x256xf32, #tpu.memory_space<vmem>>, vector<2x64x256xf32>
    %cst = arith.constant dense<0.000000e+00> : vector<2x256xf32>
    %1 = vector.multi_reduction <add>, %0, %cst [1] : vector<2x64x256xf32> to vector<2x256xf32>
    %c0_2 = arith.constant 0 : index
    %c0_3 = arith.constant 0 : index
    %2 = vector.load %arg2[%c0_2, %c0_3] : memref<1x256xi32, #tpu.memory_space<vmem>>, vector<1x256xi32>
    %c0_4 = arith.constant 0 : index
    %c0_5 = arith.constant 0 : index
    %3 = vector.load %arg3[%c0_4, %c0_5] : memref<1x256xi32, #tpu.memory_space<vmem>>, vector<1x256xi32>
    %4 = vector.extract_strided_slice %1 {offsets = [0, 240], sizes = [2, 16], strides = [1, 1]} : vector<2x256xf32> to vector<2x16xf32>
    %5 = vector.extract_strided_slice %1 {offsets = [0, 0], sizes = [2, 240], strides = [1, 1]} : vector<2x256xf32> to vector<2x240xf32>
    %6 = tpu.concatenate %4, %5 in 1 : vector<2x16xf32>, vector<2x240xf32> -> vector<2x256xf32>
    %c1_i32 = arith.constant 1 : i32
    %7 = vector.broadcast %c1_i32 : i32 to vector<1x256xi32>
    %8 = arith.cmpi sge, %2, %7 : vector<1x256xi32>
    %cst_6 = arith.constant 0.000000e+00 : f32
    %9 = vector.shape_cast %8 : vector<1x256xi1> to vector<1x256xi1>
    %10 = vector.broadcast %9 : vector<1x256xi1> to vector<2x256xi1>
    %11 = vector.broadcast %cst_6 : f32 to vector<2x256xf32>
    %12 = arith.select %10, %6, %11 : vector<2x256xi1>, vector<2x256xf32>
    %13 = arith.addf %1, %12 : vector<2x256xf32>
    %14 = vector.extract_strided_slice %1 {offsets = [0, 16], sizes = [2, 240], strides = [1, 1]} : vector<2x256xf32> to vector<2x240xf32>
    %15 = vector.extract_strided_slice %1 {offsets = [0, 0], sizes = [2, 16], strides = [1, 1]} : vector<2x256xf32> to vector<2x16xf32>
    %16 = tpu.concatenate %14, %15 in 1 : vector<2x240xf32>, vector<2x16xf32> -> vector<2x256xf32>
    %c15_i32 = arith.constant 15 : i32
    %17 = vector.broadcast %c15_i32 : i32 to vector<1x256xi32>
    %18 = arith.cmpi slt, %2, %17 : vector<1x256xi32>
    %cst_7 = arith.constant 0.000000e+00 : f32
    %19 = vector.shape_cast %18 : vector<1x256xi1> to vector<1x256xi1>
    %20 = vector.broadcast %19 : vector<1x256xi1> to vector<2x256xi1>
    %21 = vector.broadcast %cst_7 : f32 to vector<2x256xf32>
    %22 = arith.select %20, %16, %21 : vector<2x256xi1>, vector<2x256xf32>
    %23 = arith.addf %13, %22 : vector<2x256xf32>
    %24 = vector.extract_strided_slice %23 {offsets = [0, 255], sizes = [2, 1], strides = [1, 1]} : vector<2x256xf32> to vector<2x1xf32>
    %25 = vector.extract_strided_slice %23 {offsets = [0, 0], sizes = [2, 255], strides = [1, 1]} : vector<2x256xf32> to vector<2x255xf32>
    %26 = tpu.concatenate %24, %25 in 1 : vector<2x1xf32>, vector<2x255xf32> -> vector<2x256xf32>
    %c1_i32_8 = arith.constant 1 : i32
    %27 = vector.broadcast %c1_i32_8 : i32 to vector<1x256xi32>
    %28 = arith.cmpi sge, %3, %27 : vector<1x256xi32>
    %cst_9 = arith.constant 0.000000e+00 : f32
    %29 = vector.shape_cast %28 : vector<1x256xi1> to vector<1x256xi1>
    %30 = vector.broadcast %29 : vector<1x256xi1> to vector<2x256xi1>
    %31 = vector.broadcast %cst_9 : f32 to vector<2x256xf32>
    %32 = arith.select %30, %26, %31 : vector<2x256xi1>, vector<2x256xf32>
    %33 = arith.addf %23, %32 : vector<2x256xf32>
    %34 = vector.extract_strided_slice %23 {offsets = [0, 1], sizes = [2, 255], strides = [1, 1]} : vector<2x256xf32> to vector<2x255xf32>
    %35 = vector.extract_strided_slice %23 {offsets = [0, 0], sizes = [2, 1], strides = [1, 1]} : vector<2x256xf32> to vector<2x1xf32>
    %36 = tpu.concatenate %34, %35 in 1 : vector<2x255xf32>, vector<2x1xf32> -> vector<2x256xf32>
    %c15_i32_10 = arith.constant 15 : i32
    %37 = vector.broadcast %c15_i32_10 : i32 to vector<1x256xi32>
    %38 = arith.cmpi slt, %3, %37 : vector<1x256xi32>
    %cst_11 = arith.constant 0.000000e+00 : f32
    %39 = vector.shape_cast %38 : vector<1x256xi1> to vector<1x256xi1>
    %40 = vector.broadcast %39 : vector<1x256xi1> to vector<2x256xi1>
    %41 = vector.broadcast %cst_11 : f32 to vector<2x256xf32>
    %42 = arith.select %40, %36, %41 : vector<2x256xi1>, vector<2x256xf32>
    %43 = arith.addf %33, %42 : vector<2x256xf32>
    %44 = vector.shape_cast %43 : vector<2x256xf32> to vector<1x2x256xf32>
    %cst_12 = arith.constant dense<0.000000e+00> : vector<1xf32>
    %45 = vector.multi_reduction <add>, %44, %cst_12 [1, 2] : vector<1x2x256xf32> to vector<1xf32>
    %46 = vector.shape_cast %45 : vector<1xf32> to vector<1x1x1xf32>
    %47 = vector.extract %46[0, 0, 0] : f32 from vector<1x1x1xf32>
    %48 = vector.broadcast %47 : f32 to vector<1x1xf32>
    %cst_13 = arith.constant 0.001953125 : f32
    %49 = vector.broadcast %cst_13 : f32 to vector<1x1xf32>
    %50 = arith.mulf %48, %49 : vector<1x1xf32>
    %51 = vector.broadcast %50 : vector<1x1xf32> to vector<2x256xf32>
    %52 = arith.subf %43, %51 : vector<2x256xf32>
    %53 = arith.mulf %52, %52 : vector<2x256xf32>
    %54 = vector.shape_cast %53 : vector<2x256xf32> to vector<1x2x256xf32>
    %cst_14 = arith.constant dense<0.000000e+00> : vector<1xf32>
    %55 = vector.multi_reduction <add>, %54, %cst_14 [1, 2] : vector<1x2x256xf32> to vector<1xf32>
    %56 = vector.shape_cast %55 : vector<1xf32> to vector<1x1x1xf32>
    %57 = vector.extract %56[0, 0, 0] : f32 from vector<1x1x1xf32>
    %58 = vector.broadcast %57 : f32 to vector<1x1xf32>
    %cst_15 = arith.constant 0.001953125 : f32
    %59 = vector.broadcast %cst_15 : f32 to vector<1x1xf32>
    %60 = arith.mulf %58, %59 : vector<1x1xf32>
    %cst_16 = arith.constant 9.99999974E-6 : f32
    %61 = vector.broadcast %cst_16 : f32 to vector<1x1xf32>
    %62 = arith.addf %60, %61 : vector<1x1xf32>
    %63 = math.rsqrt %62 : vector<1x1xf32>
    %c0_17 = arith.constant 0 : index
    %c0_18 = arith.constant 0 : index
    %64 = vector.load %arg4[%c0_17, %c0_18] : memref<32x1xf32, #tpu.memory_space<vmem>>, vector<32x1xf32>
    %65 = vector.broadcast %63 : vector<1x1xf32> to vector<32x1xf32>
    %66 = arith.mulf %64, %65 : vector<32x1xf32>
    %c0_19 = arith.constant 0 : index
    %c0_20 = arith.constant 0 : index
    %67 = vector.load %arg5[%c0_19, %c0_20] : memref<32x1xf32, #tpu.memory_space<vmem>>, vector<32x1xf32>
    %68 = vector.broadcast %50 : vector<1x1xf32> to vector<32x1xf32>
    %69 = arith.mulf %68, %66 : vector<32x1xf32>
    %70 = arith.subf %67, %69 : vector<32x1xf32>
    %71 = vector.shape_cast %43 : vector<2x256xf32> to vector<2x1x256xf32>
    %72 = vector.shape_cast %66 : vector<32x1xf32> to vector<1x32x1xf32>
    %73 = vector.broadcast %71 : vector<2x1x256xf32> to vector<2x32x256xf32>
    %74 = vector.broadcast %72 : vector<1x32x1xf32> to vector<2x32x256xf32>
    %75 = arith.mulf %73, %74 : vector<2x32x256xf32>
    %76 = vector.shape_cast %70 : vector<32x1xf32> to vector<1x32x1xf32>
    %77 = vector.broadcast %76 : vector<1x32x1xf32> to vector<2x32x256xf32>
    %78 = arith.addf %75, %77 : vector<2x32x256xf32>
    %cst_21 = arith.constant 0.000000e+00 : f32
    %79 = vector.broadcast %cst_21 : f32 to vector<2x32x256xf32>
    %80 = arith.maximumf %78, %79 : vector<2x32x256xf32>
    %c0_22 = arith.constant 0 : index
    %c0_23 = arith.constant 0 : index
    %c0_24 = arith.constant 0 : index
    %81 = vector.load %arg6[%c0_22, %c0_23, %c0_24] : memref<2x32x256xf32, #tpu.memory_space<vmem>>, vector<2x32x256xf32>
    tpu.vector_store %arg6[%c0_22, %c0_23, %c0_24], %80 {strides = array<i32>} : memref<2x32x256xf32, #tpu.memory_space<vmem>>, vector<2x32x256xf32>,
    return
  }
  func.func @transform_0(%arg0: i32) -> (i32, i32, i32) {
    %c0_i32 = arith.constant 0 : i32
    %c0_i32_0 = arith.constant 0 : i32
    %c0_i32_1 = arith.constant 0 : i32
    %c0_i32_2 = arith.constant 0 : i32
    return %c0_i32, %c0_i32_0, %c0_i32_1 : i32, i32, i32
  }
  func.func @transform_1(%arg0: i32) -> (i32, i32) {
    %c0_i32 = arith.constant 0 : i32
    %c0_i32_0 = arith.constant 0 : i32
    %c0_i32_1 = arith.constant 0 : i32
    return %c0_i32, %c0_i32_0 : i32, i32
  }
  func.func @transform_2(%arg0: i32) -> (i32, i32) {
    %c0_i32 = arith.constant 0 : i32
    %c0_i32_0 = arith.constant 0 : i32
    %c0_i32_1 = arith.constant 0 : i32
    return %c0_i32, %c0_i32_0 : i32, i32
  }
  func.func @transform_3(%arg0: i32) -> (i32, i32) {
    %c0_i32 = arith.constant 0 : i32
    %c0_i32_0 = arith.constant 0 : i32
    return %arg0, %c0_i32 : i32, i32
  }
  func.func @transform_4(%arg0: i32) -> (i32, i32) {
    %c0_i32 = arith.constant 0 : i32
    %c0_i32_0 = arith.constant 0 : i32
    return %arg0, %c0_i32 : i32, i32
  }
  func.func @transform_5(%arg0: i32) -> (i32, i32, i32) {
    %c0_i32 = arith.constant 0 : i32
    %c0_i32_0 = arith.constant 0 : i32
    %c0_i32_1 = arith.constant 0 : i32
    return %c0_i32, %arg0, %c0_i32_0 : i32, i32, i32
  }
}

</mosaic_0001>

<llo_original>
// kernel: cnn1_forward.1
$region0: #{cnn1_forward.1}
  #allocation0 [shape = 'u32[]', space=smem, size = 0x4, offset = 0x4, fixed_abs, tag = 'smem constant byte address 0x4 - core index']
  #allocation1 [shape = 'u32[144,128]{1,0:T(1,128)}', space=vmem, size = 0x12000, scoped, tag = 'internal scratch']
  %s0 = inlined_call_operand.vmem [shape: f32[2,64,256], index: 0, kind: input, shape index: {}]
  %s1 = inlined_call_operand.vmem [shape: s32[1,256], index: 1, kind: input, shape index: {}]
  %s2 = inlined_call_operand.vmem [shape: s32[1,256], index: 2, kind: input, shape index: {}]
  %s3 = inlined_call_operand.vmem [shape: f32[64,1], index: 3, kind: input, shape index: {}]
  %s4 = inlined_call_operand.vmem [shape: f32[64,1], index: 4, kind: input, shape index: {}]
  %s5 = inlined_call_operand.vmem [shape: f32[2,64,256], index: 5, kind: output, shape index: {}]
  %s6 = sld [smem:[#allocation0]]
  $region72: #{cnn1_forward.1} parent=0
    _
  %s8 = ssub.s32 1, %s6
  %s9 = scalar_select 0, %s8, %s6
  $region1: #{cnn1_forward.1} parent=0
    #allocation2 [shape = 'u8[131072]{0}', space=vmem, size = 0x20000, scoped, tag = 'output window, operand 0']
    loop: start=0, step=1, limit=4
    $region2: #{cnn1_forward.1} parent=1 // loop_pre_header
      _
    $region3: #{cnn1_forward.1} parent=1 // loop_header
      %s11 = sphi 0, %s15
      %p12 = scmp.ge.s32.totalorder %s11, 4
      %s19 = sphi 0, %s19
      %s21 = sphi 0, %s19
      %s22 = sphi 0, %s21
      %s36 = sphi 0, %s22
      %s40 = sphi 0, %s40
      %s42 = sphi 0, %s40
      %s43 = sphi 0, %s42
      %s57 = sphi 0, %s43
      %s61 = sphi 0, %s61
      %s63 = sphi 0, %s61
      %s64 = sphi 0, %s63
      %s78 = sphi 0, %s64
      %s84 = sphi 0, %s86
      %s87 = sphi 0, %s84
      %s88 = sphi 0, %s87
      %s104 = sphi 0, %s88
      %s110 = sphi 0, %s112
      %s113 = sphi 0, %s110
      %s114 = sphi 0, %s113
      %s130 = sphi 0, %s114
      %s136 = sphi 0, %s138
      %s139 = sphi 0, %s136
      %s140 = sphi 0, %s139
      %s156 = sphi 0, %s140
    $region4: #{cnn1_forward.1} parent=1 // loop_header_branch
      %14 = sbr.rel (%p12) target = $region8
    $region5: #{cnn1_forward.1} parent=1 // loop_body
      %s16 = ssub.s32 %s11, 1
      %s17 = ssub.s32 %s11, 2
      %s18 = sadd.s32 %s11, 1
      %s20 = sadd.s32 %s19, 1
      %p23 = scmp.eq.s32.totalorder %s11, 1
      %p24 = scmp.ne.s32.totalorder %s19, %s21
      %p25 = scmp.eq.s32.totalorder %s11, 0
      %p26 = por %p24, %p25
      %p27 = scmp.ne.s32.totalorder %s19, %s21
      %p28 = scmp.eq.s32.totalorder %s16, 1
      %p29 = por %p27, %p28
      %p30 = scmp.ne.s32.totalorder %s21, %s22
      %p31 = scmp.eq.s32.totalorder %s16, 0
      %p32 = por %p30, %p31
      %p33 = scmp.ne.s32.totalorder %s21, %s22
      %p34 = scmp.eq.s32.totalorder %s17, 1
      %p35 = por %p33, %p34
      %p37 = scmp.ne.s32.totalorder %s22, %s36
      %p38 = scmp.eq.s32.totalorder %s17, 0
      %p39 = por %p37, %p38
      %s41 = sadd.s32 %s40, 1
      %p44 = scmp.eq.s32.totalorder %s11, 1
      %p45 = scmp.ne.s32.totalorder %s40, %s42
      %p46 = scmp.eq.s32.totalorder %s11, 0
      %p47 = por %p45, %p46
      %p48 = scmp.ne.s32.totalorder %s40, %s42
      %p49 = scmp.eq.s32.totalorder %s16, 1
      %p50 = por %p48, %p49
      %p51 = scmp.ne.s32.totalorder %s42, %s43
      %p52 = scmp.eq.s32.totalorder %s16, 0
      %p53 = por %p51, %p52
      %p54 = scmp.ne.s32.totalorder %s42, %s43
      %p55 = scmp.eq.s32.totalorder %s17, 1
      %p56 = por %p54, %p55
      %p58 = scmp.ne.s32.totalorder %s43, %s57
      %p59 = scmp.eq.s32.totalorder %s17, 0
      %p60 = por %p58, %p59
      %s62 = sadd.s32 %s61, 1
      %p65 = scmp.eq.s32.totalorder %s11, 1
      %p66 = scmp.ne.s32.totalorder %s61, %s63
      %p67 = scmp.eq.s32.totalorder %s11, 0
      %p68 = por %p66, %p67
      %p69 = scmp.ne.s32.totalorder %s61, %s63
      %p70 = scmp.eq.s32.totalorder %s16, 1
      %p71 = por %p69, %p70
      %p72 = scmp.ne.s32.totalorder %s63, %s64
      %p73 = scmp.eq.s32.totalorder %s16, 0
      %p74 = por %p72, %p73
      %p75 = scmp.ne.s32.totalorder %s63, %s64
      %p76 = scmp.eq.s32.totalorder %s17, 1
      %p77 = por %p75, %p76
      %p79 = scmp.ne.s32.totalorder %s64, %s78
      %p80 = scmp.eq.s32.totalorder %s17, 0
      %p81 = por %p79, %p80
      %s82 = ssub.s32 %s11, %s18
      %p83 = scmp.eq.s32.totalorder %s82, 0
      %s85 = sadd.s32 %s84, 1
      %s86 = scalar_select %p83, %s84, %s85
      %p89 = pneg %p83
      %p90 = scmp.eq.s32.totalorder %s11, 1
      %p91 = por %p89, %p90
      %p92 = scmp.ne.s32.totalorder %s84, %s87
      %p93 = scmp.eq.s32.totalorder %s11, 0
      %p94 = por %p92, %p93
      %p95 = scmp.ne.s32.totalorder %s84, %s87
      %p96 = scmp.eq.s32.totalorder %s16, 1
      %p97 = por %p95, %p96
      %p98 = scmp.ne.s32.totalorder %s87, %s88
      %p99 = scmp.eq.s32.totalorder %s16, 0
      %p100 = por %p98, %p99
      %p101 = scmp.ne.s32.totalorder %s87, %s88
      %p102 = scmp.eq.s32.totalorder %s17, 1
      %p103 = por %p101, %p102
      %p105 = scmp.ne.s32.totalorder %s88, %s104
      %p106 = scmp.eq.s32.totalorder %s17, 0
      %p107 = por %p105, %p106
      %s108 = ssub.s32 %s11, %s18
      %p109 = scmp.eq.s32.totalorder %s108, 0
      %s111 = sadd.s32 %s110, 1
      %s112 = scalar_select %p109, %s110, %s111
      %p115 = pneg %p109
      %p116 = scmp.eq.s32.totalorder %s11, 1
      %p117 = por %p115, %p116
      %p118 = scmp.ne.s32.totalorder %s110, %s113
      %p119 = scmp.eq.s32.totalorder %s11, 0
      %p120 = por %p118, %p119
      %p121 = scmp.ne.s32.totalorder %s110, %s113
      %p122 = scmp.eq.s32.totalorder %s16, 1
      %p123 = por %p121, %p122
      %p124 = scmp.ne.s32.totalorder %s113, %s114
      %p125 = scmp.eq.s32.totalorder %s16, 0
      %p126 = por %p124, %p125
      %p127 = scmp.ne.s32.totalorder %s113, %s114
      %p128 = scmp.eq.s32.totalorder %s17, 1
      %p129 = por %p127, %p128
      %p131 = scmp.ne.s32.totalorder %s114, %s130
      %p132 = scmp.eq.s32.totalorder %s17, 0
      %p133 = por %p131, %p132
      %s134 = ssub.s32 %s11, %s18
      %p135 = scmp.eq.s32.totalorder %s134, 0
      %s137 = sadd.s32 %s136, 1
      %s138 = scalar_select %p135, %s136, %s137
      %p141 = pneg %p135
      %p142 = scmp.eq.s32.totalorder %s11, 1
      %p143 = por %p141, %p142
      %p144 = scmp.ne.s32.totalorder %s136, %s139
      %p145 = scmp.eq.s32.totalorder %s11, 0
      %p146 = por %p144, %p145
      %p147 = scmp.ne.s32.totalorder %s136, %s139
      %p148 = scmp.eq.s32.totalorder %s16, 1
      %p149 = por %p147, %p148
      %p150 = scmp.ne.s32.totalorder %s139, %s140
      %p151 = scmp.eq.s32.totalorder %s16, 0
      %p152 = por %p150, %p151
      %p153 = scmp.ne.s32.totalorder %s139, %s140
      %p154 = scmp.eq.s32.totalorder %s17, 1
      %p155 = por %p153, %p154
      %p157 = scmp.ne.s32.totalorder %s140, %s156
      %p158 = scmp.eq.s32.totalorder %s17, 0
      %p159 = por %p157, %p158
      %p160 = scmp.le.s32.totalorder 1, %s11
      %p161 = scmp.lt.s32.totalorder %s11, 3
      %p162 = pnand %p160, %p161
      %p163 = pneg %p162
      // Predicated region
      $region9: #{cnn1_forward.1} parent=5 // pred_check
        _
      $region10: #{cnn1_forward.1} parent=5 // pred_check_branch
        %165 = sbr.rel (%p162) target = $region12
      $region11: #{cnn1_forward.1} parent=5 // pred_region
        %s166 = ssub.s32 %s11, 1
        // Predicated region
        $region13: #{cnn1_forward.1} parent=11 // pred_check
          %p167 = pneg %p32
        $region14: #{cnn1_forward.1} parent=11 // pred_check_branch
          %169 = sbr.rel (%p167) target = $region16
        $region15: #{cnn1_forward.1} parent=11 // pred_region
          _
        $region16: #{cnn1_forward.1} parent=11 // pred_fallthru
          _
        // Predicated region
        $region17: #{cnn1_forward.1} parent=11 // pred_check
          %p170 = pneg %p53
        $region18: #{cnn1_forward.1} parent=11 // pred_check_branch
          %172 = sbr.rel (%p170) target = $region20
        $region19: #{cnn1_forward.1} parent=11 // pred_region
          _
        $region20: #{cnn1_forward.1} parent=11 // pred_fallthru
          _
        // Predicated region
        $region21: #{cnn1_forward.1} parent=11 // pred_check
          %p173 = pneg %p74
        $region22: #{cnn1_forward.1} parent=11 // pred_check_branch
          %175 = sbr.rel (%p173) target = $region24
        $region23: #{cnn1_forward.1} parent=11 // pred_region
          _
        $region24: #{cnn1_forward.1} parent=11 // pred_fallthru
          _
      $region12: #{cnn1_forward.1} parent=5 // pred_fallthru
        _
      %p176 = scmp.lt.s32.totalorder %s11, 2
      // Predicated region
      $region25: #{cnn1_forward.1} parent=5 // pred_check
        %p177 = pneg %p176
      $region26: #{cnn1_forward.1} parent=5 // pred_check_branch
        %179 = sbr.rel (%p177) target = $region28
      $region27: #{cnn1_forward.1} parent=5 // pred_region
        // Predicated region
        $region29: #{cnn1_forward.1} parent=27 // pred_check
          %p180 = pneg %p94
        $region30: #{cnn1_forward.1} parent=27 // pred_check_branch
          %182 = sbr.rel (%p180) target = $region32
        $region31: #{cnn1_forward.1} parent=27 // pred_region
          %s183 = smul.u32 4, %s11
          %p184 = scmp.lt.s32.totalorder %s183, 7
          %s185 = scalar_select %p184, %s183, 7
          %s186 = smul.addr %s185, 8
          %s187 = scalar_lea.vmem %s3, %s186
          %s188 = smul.u32 4, %s11
        $region32: #{cnn1_forward.1} parent=27 // pred_fallthru
          _
        // Predicated region
        $region33: #{cnn1_forward.1} parent=27 // pred_check
          %p189 = pneg %p120
        $region34: #{cnn1_forward.1} parent=27 // pred_check_branch
          %191 = sbr.rel (%p189) target = $region36
        $region35: #{cnn1_forward.1} parent=27 // pred_region
          %s192 = smul.u32 4, %s11
          %p193 = scmp.lt.s32.totalorder %s192, 7
          %s194 = scalar_select %p193, %s192, 7
          %s195 = smul.addr %s194, 8
          %s196 = scalar_lea.vmem %s4, %s195
          %s197 = smul.u32 4, %s11
        $region36: #{cnn1_forward.1} parent=27 // pred_fallthru
          _
      $region28: #{cnn1_forward.1} parent=5 // pred_fallthru
        _
      %p198 = scmp.le.s32.totalorder 1, %s11
      %p199 = scmp.lt.s32.totalorder %s11, 3
      %p200 = pnand %p198, %p199
      %p201 = pneg %p200
      // Predicated region
      $region37: #{cnn1_forward.1} parent=5 // pred_check
        _
      $region38: #{cnn1_forward.1} parent=5 // pred_check_branch
        %203 = sbr.rel (%p200) target = $region40
      $region39: #{cnn1_forward.1} parent=5 // pred_region
        %s204 = ssub.s32 %s11, 1
        %p205 = pneg %p32
        %p206 = pneg %p29
        %p207 = pneg %p53
        %p208 = pneg %p50
        %p209 = pneg %p74
        %p210 = pneg %p71
        %s211 = smul.u32 4, %s16
        %p212 = scmp.lt.s32.totalorder %s211, 7
        %s213 = scalar_select %p212, %s211, 7
        %s214 = smul.addr %s213, 8
        %s215 = scalar_lea.vmem %s3, %s214
        %p216 = pneg %p100
        %p217 = pneg %p97
        %s218 = smul.u32 4, %s16
        %p219 = scmp.lt.s32.totalorder %s218, 7
        %s220 = scalar_select %p219, %s218, 7
        %s221 = smul.addr %s220, 8
        %s222 = scalar_lea.vmem %s4, %s221
        %p223 = pneg %p126
        %p224 = pneg %p123
        %p225 = pneg %p152
        %p226 = pneg %p149
        %s227 = sand.u32 %s139, 1
        %s228 = sand.u32 %s139, 1
        %s229 = smul.addr %s228, 128
        %s230 = scalar_lea.vmem [#allocation2], %s229
        %s231 = smul.u32 4, %s16
        %p232 = scmp.lt.s32.totalorder %s231, 7
        %s233 = scalar_select %p232, %s231, 7
        %s234 = smul.addr %s233, 8
        %s235 = scalar_lea.vmem %s3, %s234
        %s236 = smul.u32 4, %s16
        %s237 = smul.u32 4, %s16
        %p238 = scmp.lt.s32.totalorder %s237, 7
        %s239 = scalar_select %p238, %s237, 7
        %s240 = smul.addr %s239, 8
        %s241 = scalar_lea.vmem %s4, %s240
        %s242 = smul.u32 4, %s16
        %s243 = smul.u32 4, %s16
        %v244 = vld [vmem:[%s0] sm:$0xff]
        %v245 = vld [vmem:[%s0 + $0x8] sm:$0xff]
        %v246 = vld [vmem:[%s0 + $0x10] sm:$0xff]
        %v247 = vld [vmem:[%s0 + $0x18] sm:$0xff]
        %v248 = vld [vmem:[%s0 + $0x20] sm:$0xff]
        %v249 = vld [vmem:[%s0 + $0x28] sm:$0xff]
        %v250 = vld [vmem:[%s0 + $0x30] sm:$0xff]
        %v251 = vld [vmem:[%s0 + $0x38] sm:$0xff]
        %v252 = vld [vmem:[%s0 + $0x40] sm:$0xff]
        %v253 = vld [vmem:[%s0 + $0x48] sm:$0xff]
        %v254 = vld [vmem:[%s0 + $0x50] sm:$0xff]
        %v255 = vld [vmem:[%s0 + $0x58] sm:$0xff]
        %v256 = vld [vmem:[%s0 + $0x60] sm:$0xff]
        %v257 = vld [vmem:[%s0 + $0x68] sm:$0xff]
        %v258 = vld [vmem:[%s0 + $0x70] sm:$0xff]
        %v259 = vld [vmem:[%s0 + $0x78] sm:$0xff]
        %v260 = vld [vmem:[%s0 + $0x80] sm:$0xff]
        %v261 = vld [vmem:[%s0 + $0x88] sm:$0xff]
        %v262 = vld [vmem:[%s0 + $0x90] sm:$0xff]
        %v263 = vld [vmem:[%s0 + $0x98] sm:$0xff]
        %v264 = vld [vmem:[%s0 + $0xa0] sm:$0xff]
        %v265 = vld [vmem:[%s0 + $0xa8] sm:$0xff]
        %v266 = vld [vmem:[%s0 + $0xb0] sm:$0xff]
        %v267 = vld [vmem:[%s0 + $0xb8] sm:$0xff]
        %v268 = vld [vmem:[%s0 + $0xc0] sm:$0xff]
        %v269 = vld [vmem:[%s0 + $0xc8] sm:$0xff]
        %v270 = vld [vmem:[%s0 + $0xd0] sm:$0xff]
        %v271 = vld [vmem:[%s0 + $0xd8] sm:$0xff]
        %v272 = vld [vmem:[%s0 + $0xe0] sm:$0xff]
        %v273 = vld [vmem:[%s0 + $0xe8] sm:$0xff]
        %v274 = vld [vmem:[%s0 + $0xf0] sm:$0xff]
        %v275 = vld [vmem:[%s0 + $0xf8] sm:$0xff]
        %v276 = vadd.f32 %v244, %v246
        %v277 = vadd.f32 %v276, %v248
        %v278 = vadd.f32 %v277, %v250
        %v279 = vadd.f32 %v278, %v252
        %v280 = vadd.f32 %v279, %v254
        %v281 = vadd.f32 %v280, %v256
        %v282 = vadd.f32 %v281, %v258
        %v283 = vrot.slane %v282, 4
        %v284 = vadd.f32 %v282, %v283
        %v285 = vrot.slane %v284, 2
        %v286 = vadd.f32 %v284, %v285
        %v287 = vrot.slane %v286, 1
        %v288 = vadd.f32 %v286, %v287
        %v289 = vadd.f32 %v245, %v247
        %v290 = vadd.f32 %v289, %v249
        %v291 = vadd.f32 %v290, %v251
        %v292 = vadd.f32 %v291, %v253
        %v293 = vadd.f32 %v292, %v255
        %v294 = vadd.f32 %v293, %v257
        %v295 = vadd.f32 %v294, %v259
        %v296 = vrot.slane %v295, 4
        %v297 = vadd.f32 %v295, %v296
        %v298 = vrot.slane %v297, 2
        %v299 = vadd.f32 %v297, %v298
        %v300 = vrot.slane %v299, 1
        %v301 = vadd.f32 %v299, %v300
        %v302 = vadd.f32 %v260, %v262
        %v303 = vadd.f32 %v302, %v264
        %v304 = vadd.f32 %v303, %v266
        %v305 = vadd.f32 %v304, %v268
        %v306 = vadd.f32 %v305, %v270
        %v307 = vadd.f32 %v306, %v272
        %v308 = vadd.f32 %v307, %v274
        %v309 = vrot.slane %v308, 4
        %v310 = vadd.f32 %v308, %v309
        %v311 = vrot.slane %v310, 2
        %v312 = vadd.f32 %v310, %v311
        %v313 = vrot.slane %v312, 1
        %v314 = vadd.f32 %v312, %v313
        %v315 = vadd.f32 %v261, %v263
        %v316 = vadd.f32 %v315, %v265
        %v317 = vadd.f32 %v316, %v267
        %v318 = vadd.f32 %v317, %v269
        %v319 = vadd.f32 %v318, %v271
        %v320 = vadd.f32 %v319, %v273
        %v321 = vadd.f32 %v320, %v275
        %v322 = vrot.slane %v321, 4
        %v323 = vadd.f32 %v321, %v322
        %v324 = vrot.slane %v323, 2
        %v325 = vadd.f32 %v323, %v324
        %v326 = vrot.slane %v325, 1
        %v327 = vadd.f32 %v325, %v326
        %v328 = vld [vmem:[%s1] sm:$0x3]
        %v329 = vld [vmem:[%s2] sm:$0x3]
        %vm332 = vcmask 1041409
        %v333 = vsel %vm332, %v327, %v301
        %334 = vrot.lane.b32.xlu0 %v333, 16
        %v335 = vpop.permute.xlu0 %334
        %v339 = vsel %vm332, %v314, %v288
        %340 = vrot.lane.b32.xlu0 %v339, 16
        %v341 = vpop.permute.xlu0 %340
        %vm342 = vcmask 130048
        %v343 = vsel %vm342, %v341, %v335
        %v346 = vsel %vm342, %v335, %v341
        %vm347 = vcmp.ge.s32.totalorder %v328, 1
        %v348 = vsel %vm347, 1, 0
        %v349 = vlaneseq
        %v350 = vshrl.u32 %v349, 7
        %v351 = vsub.s32 0, %v350
        %v352 = vrot.slane %v348, %v351
        %v353 = vlaneseq
        %v354 = vshrl.u32 %v353, 7
        %v355 = vsub.s32 1, %v354
        %v356 = vrot.slane %v348, %v355
        %vm357 = vcmp.eq.s32.totalorder %v352, 1
        %vm358 = vcmp.eq.s32.totalorder %v356, 1
        %v359 = vsel %vm357, %v346, 0.0
        %v360 = vsel %vm358, %v343, 0.0
        %v363 = vrot.slane %v359, 1
        %v364 = vrot.slane %v360, 1
        %v369 = vadd.f32 %v288, %v359
        %v370 = vadd.f32 %v301, %v360
        %v371 = vadd.f32 %v314, %v363
        %v372 = vadd.f32 %v327, %v364
        %373 = vrot.lane.b32.xlu0 %v339, 112
        %v374 = vpop.permute.xlu0 %373
        %375 = vrot.lane.b32.xlu0 %v333, 112
        %v376 = vpop.permute.xlu0 %375
        %vm377 = vcmask 916480
        %v378 = vsel %vm377, %v374, %v376
        %v382 = vsel %vm377, %v376, %v374
        %vm383 = vcmp.lt.s32.totalorder %v328, 15
        %v384 = vsel %vm383, 1, 0
        %v385 = vlaneseq
        %v386 = vshrl.u32 %v385, 7
        %v387 = vsub.s32 0, %v386
        %v388 = vrot.slane %v384, %v387
        %v389 = vlaneseq
        %v390 = vshrl.u32 %v389, 7
        %v391 = vsub.s32 1, %v390
        %v392 = vrot.slane %v384, %v391
        %vm393 = vcmp.eq.s32.totalorder %v388, 1
        %vm394 = vcmp.eq.s32.totalorder %v392, 1
        %v395 = vsel %vm393, %v378, 0.0
        %v396 = vsel %vm394, %v382, 0.0
        %v399 = vrot.slane %v395, 1
        %v400 = vrot.slane %v396, 1
        %v405 = vadd.f32 %v369, %v395
        %v406 = vadd.f32 %v370, %v396
        %v407 = vadd.f32 %v371, %v399
        %v408 = vadd.f32 %v372, %v400
        %v411 = vrot.slane %v408, 7
        %v412 = vsel %vm332, %v411, %v406
        %413 = vrot.lane.b32.xlu0 %v412, 1
        %v414 = vpop.permute.xlu0 %413
        %v418 = vrot.slane %v407, 7
        %v419 = vsel %vm332, %v418, %v405
        %420 = vrot.lane.b32.xlu0 %v419, 1
        %v421 = vpop.permute.xlu0 %420
        %vm422 = vcmask 7168
        %v423 = vsel %vm422, %v421, %v414
        %v426 = vsel %vm422, %v414, %v421
        %vm427 = vcmp.ge.s32.totalorder %v329, 1
        %v428 = vsel %vm427, 1, 0
        %v429 = vlaneseq
        %v430 = vshrl.u32 %v429, 7
        %v431 = vsub.s32 0, %v430
        %v432 = vrot.slane %v428, %v431
        %v433 = vlaneseq
        %v434 = vshrl.u32 %v433, 7
        %v435 = vsub.s32 1, %v434
        %v436 = vrot.slane %v428, %v435
        %vm437 = vcmp.eq.s32.totalorder %v432, 1
        %vm438 = vcmp.eq.s32.totalorder %v436, 1
        %v439 = vsel %vm437, %v426, 0.0
        %v440 = vsel %vm438, %v423, 0.0
        %v443 = vrot.slane %v439, 1
        %v444 = vrot.slane %v440, 1
        %v449 = vadd.f32 %v405, %v439
        %v450 = vadd.f32 %v406, %v440
        %v451 = vadd.f32 %v407, %v443
        %v452 = vadd.f32 %v408, %v444
        %453 = vrot.lane.b32.xlu0 %v419, 127
        %v454 = vpop.permute.xlu0 %453
        %455 = vrot.lane.b32.xlu0 %v412, 127
        %v456 = vpop.permute.xlu0 %455
        %vm457 = vcmask 1039360
        %v458 = vsel %vm457, %v454, %v456
        %v462 = vsel %vm457, %v456, %v454
        %vm463 = vcmp.lt.s32.totalorder %v329, 15
        %v464 = vsel %vm463, 1, 0
        %v465 = vlaneseq
        %v466 = vshrl.u32 %v465, 7
        %v467 = vsub.s32 0, %v466
        %v468 = vrot.slane %v464, %v467
        %v469 = vlaneseq
        %v470 = vshrl.u32 %v469, 7
        %v471 = vsub.s32 1, %v470
        %v472 = vrot.slane %v464, %v471
        %vm473 = vcmp.eq.s32.totalorder %v468, 1
        %vm474 = vcmp.eq.s32.totalorder %v472, 1
        %v475 = vsel %vm473, %v458, 0.0
        %v476 = vsel %vm474, %v462, 0.0
        %v479 = vrot.slane %v475, 1
        %v480 = vrot.slane %v476, 1
        %v485 = vadd.f32 %v449, %v475
        %v486 = vadd.f32 %v450, %v476
        %v487 = vadd.f32 %v451, %v479
        %v488 = vadd.f32 %v452, %v480
        %v493 = vrot.slane %v487, 7
        %v494 = vsel %vm332, %v493, %v485
        %v495 = vrot.slane %v488, 7
        %v496 = vsel %vm332, %v495, %v486
        %vm499 = vcmask 1041408
        %v500 = vsel %vm499, %v494, 0.0
        %v501 = vsel %vm499, %v496, 0.0
        %v502 = vadd.f32 %v500, %v501
        %503 = vadd.xlane.f32.xlu0 %v502
        %v504 = vpop.xlane.xlu0 %503
        %v505 = vrot.slane %v504, 4
        %v506 = vadd.f32 %v504, %v505
        %v507 = vrot.slane %v506, 2
        %v508 = vadd.f32 %v506, %v507
        %v509 = vrot.slane %v508, 1
        %v510 = vadd.f32 %v508, %v509
        %s511 = vtos %v510
        %v512 = vstv %s511
        %v513 = vmul.f32 %v512, 0.001953125
        %v514 = vsub.f32 %v485, %v513
        %v515 = vsub.f32 %v486, %v513
        %v516 = vsub.f32 %v487, %v513
        %v517 = vsub.f32 %v488, %v513
        %v518 = vmul.f32 %v514, %v514
        %v519 = vmul.f32 %v515, %v515
        %v520 = vmul.f32 %v516, %v516
        %v521 = vmul.f32 %v517, %v517
        %v526 = vrot.slane %v520, 7
        %v527 = vsel %vm332, %v526, %v518
        %v528 = vrot.slane %v521, 7
        %v529 = vsel %vm332, %v528, %v519
        %v532 = vsel %vm499, %v527, 0.0
        %v533 = vsel %vm499, %v529, 0.0
        %v534 = vadd.f32 %v532, %v533
        %535 = vadd.xlane.f32.xlu0 %v534
        %v536 = vpop.xlane.xlu0 %535
        %v537 = vrot.slane %v536, 4
        %v538 = vadd.f32 %v536, %v537
        %v539 = vrot.slane %v538, 2
        %v540 = vadd.f32 %v538, %v539
        %v541 = vrot.slane %v540, 1
        %v542 = vadd.f32 %v540, %v541
        %s543 = vtos %v542
        %v544 = vstv %s543
        %v545 = vmul.f32 %v544, 0.001953125
        %v546 = vadd.f32 %v545, 1e-05
        %v547 = vrsqrt.pop %v546
        %v548 = vld [vmem:[%s235] sm:$0xff]
        %v549 = vld [vmem:[%s235 + $0x8] sm:$0xff]
        %v550 = vld [vmem:[%s235 + $0x10] sm:$0xff]
        %v551 = vld [vmem:[%s235 + $0x18] sm:$0xff]
        %v552 = vmul.f32 %v548, %v547
        %v553 = vmul.f32 %v549, %v547
        %v554 = vmul.f32 %v550, %v547
        %v555 = vmul.f32 %v551, %v547
        %v556 = vld [vmem:[%s241] sm:$0xff]
        %v557 = vld [vmem:[%s241 + $0x8] sm:$0xff]
        %v558 = vld [vmem:[%s241 + $0x10] sm:$0xff]
        %v559 = vld [vmem:[%s241 + $0x18] sm:$0xff]
        %v560 = vmul.f32 %v513, %v552
        %v561 = vmul.f32 %v513, %v553
        %v562 = vmul.f32 %v513, %v554
        %v563 = vmul.f32 %v513, %v555
        %v564 = vsub.f32 %v556, %v560
        %v565 = vsub.f32 %v557, %v561
        %v566 = vsub.f32 %v558, %v562
        %v567 = vsub.f32 %v559, %v563
        %v568 = vlaneseq
        %v569 = vshrl.u32 %v568, 7
        %v570 = vsub.s32 0, %v569
        %v571 = vrot.slane %v485, %v570
        %v572 = vlaneseq
        %v573 = vshrl.u32 %v572, 7
        %v574 = vsub.s32 0, %v573
        %v575 = vrot.slane %v486, %v574
        %v576 = vlaneseq
        %v577 = vshrl.u32 %v576, 7
        %v578 = vsub.s32 0, %v577
        %v579 = vrot.slane %v487, %v578
        %v580 = vlaneseq
        %v581 = vshrl.u32 %v580, 7
        %v582 = vsub.s32 0, %v581
        %v583 = vrot.slane %v488, %v582
        %585 = vset.pattern.permute.xlu0 0
        %586 = vperm.xlu0 %585, %v552
        %v587 = vpop.permute.xlu0 %586
        %590 = vset.pattern.permute.xlu0 0
        %591 = vperm.xlu0 %590, %v553
        %v592 = vpop.permute.xlu0 %591
        %595 = vset.pattern.permute.xlu0 0
        %596 = vperm.xlu0 %595, %v554
        %v597 = vpop.permute.xlu0 %596
        %600 = vset.pattern.permute.xlu0 0
        %601 = vperm.xlu0 %600, %v555
        %v602 = vpop.permute.xlu0 %601
        %v604 = vmul.f32 %v571, %v587
        %v605 = vmul.f32 %v575, %v587
        %v606 = vmul.f32 %v571, %v592
        %v607 = vmul.f32 %v575, %v592
        %v608 = vmul.f32 %v571, %v597
        %v609 = vmul.f32 %v575, %v597
        %v610 = vmul.f32 %v571, %v602
        %v611 = vmul.f32 %v575, %v602
        %v612 = vmul.f32 %v579, %v587
        %v613 = vmul.f32 %v583, %v587
        %v614 = vmul.f32 %v579, %v592
        %v615 = vmul.f32 %v583, %v592
        %v616 = vmul.f32 %v579, %v597
        %v617 = vmul.f32 %v583, %v597
        %v618 = vmul.f32 %v579, %v602
        %v619 = vmul.f32 %v583, %v602
        %621 = vset.pattern.permute.xlu0 0
        %622 = vperm.xlu0 %621, %v564
        %v623 = vpop.permute.xlu0 %622
        %626 = vset.pattern.permute.xlu0 0
        %627 = vperm.xlu0 %626, %v565
        %v628 = vpop.permute.xlu0 %627
        %631 = vset.pattern.permute.xlu0 0
        %632 = vperm.xlu0 %631, %v566
        %v633 = vpop.permute.xlu0 %632
        %636 = vset.pattern.permute.xlu0 0
        %637 = vperm.xlu0 %636, %v567
        %v638 = vpop.permute.xlu0 %637
        %v640 = vadd.f32 %v604, %v623
        %v641 = vadd.f32 %v605, %v623
        %v642 = vadd.f32 %v606, %v628
        %v643 = vadd.f32 %v607, %v628
        %v644 = vadd.f32 %v608, %v633
        %v645 = vadd.f32 %v609, %v633
        %v646 = vadd.f32 %v610, %v638
        %v647 = vadd.f32 %v611, %v638
        %v648 = vadd.f32 %v612, %v623
        %v649 = vadd.f32 %v613, %v623
        %v650 = vadd.f32 %v614, %v628
        %v651 = vadd.f32 %v615, %v628
        %v652 = vadd.f32 %v616, %v633
        %v653 = vadd.f32 %v617, %v633
        %v654 = vadd.f32 %v618, %v638
        %v655 = vadd.f32 %v619, %v638
        %v656 = vmax.f32 %v640, 0.0
        %v657 = vmax.f32 %v641, 0.0
        %v658 = vmax.f32 %v642, 0.0
        %v659 = vmax.f32 %v643, 0.0
        %v660 = vmax.f32 %v644, 0.0
        %v661 = vmax.f32 %v645, 0.0
        %v662 = vmax.f32 %v646, 0.0
        %v663 = vmax.f32 %v647, 0.0
        %v664 = vmax.f32 %v648, 0.0
        %v665 = vmax.f32 %v649, 0.0
        %v666 = vmax.f32 %v650, 0.0
        %v667 = vmax.f32 %v651, 0.0
        %v668 = vmax.f32 %v652, 0.0
        %v669 = vmax.f32 %v653, 0.0
        %v670 = vmax.f32 %v654, 0.0
        %v671 = vmax.f32 %v655, 0.0
        %672 = vst [vmem:[%s230] sm:$0xff] %v656
        %673 = vst [vmem:[%s230 + $0x8] sm:$0xff] %v657
        %674 = vst [vmem:[%s230 + $0x10] sm:$0xff] %v658
        %675 = vst [vmem:[%s230 + $0x18] sm:$0xff] %v659
        %676 = vst [vmem:[%s230 + $0x20] sm:$0xff] %v660
        %677 = vst [vmem:[%s230 + $0x28] sm:$0xff] %v661
        %678 = vst [vmem:[%s230 + $0x30] sm:$0xff] %v662
        %679 = vst [vmem:[%s230 + $0x38] sm:$0xff] %v663
        %680 = vst [vmem:[%s230 + $0x40] sm:$0xff] %v664
        %681 = vst [vmem:[%s230 + $0x48] sm:$0xff] %v665
        %682 = vst [vmem:[%s230 + $0x50] sm:$0xff] %v666
        %683 = vst [vmem:[%s230 + $0x58] sm:$0xff] %v667
        %684 = vst [vmem:[%s230 + $0x60] sm:$0xff] %v668
        %685 = vst [vmem:[%s230 + $0x68] sm:$0xff] %v669
        %686 = vst [vmem:[%s230 + $0x70] sm:$0xff] %v670
        %687 = vst [vmem:[%s230 + $0x78] sm:$0xff] %v671
        %s688 = sand.u32 %s139, 1
        %s689 = sand.u32 %s139, 1
        %s690 = smul.addr %s689, 128
        %s691 = scalar_lea.vmem [#allocation2], %s690
        // Predicated region
        $region41: #{cnn1_forward.1} parent=39 // pred_check
          %p692 = pneg %p149
        $region42: #{cnn1_forward.1} parent=39 // pred_check_branch
          %694 = sbr.rel (%p692) target = $region44
        $region43: #{cnn1_forward.1} parent=39 // pred_region
          %s695 = smul.u32 4, %s16
          %s696 = smul.addr %s695, 2
          %s697 = smul.addr %s696, 8
          %s698 = scalar_lea.vmem %s5, %s697
          // Predicated region
          $region45: #{cnn1_forward.1} parent=43 // pred_check
            _
          $region46: #{cnn1_forward.1} parent=43 // pred_check_branch
            %700 = sbr.rel (0) target = $region48
          $region47: #{cnn1_forward.1} parent=43 // pred_region
            // Predicated region
            $region49: #{cnn1_forward.1} parent=47 // pred_check
              _
            $region50: #{cnn1_forward.1} parent=47 // pred_check_branch
              %702 = sbr.rel (0) target = $region52
            $region51: #{cnn1_forward.1} parent=47 // pred_region
              loop: start=0, step=1, limit=1
              $region53: #{cnn1_forward.1} parent=51 // loop_pre_header
                _
              $region54: #{cnn1_forward.1} parent=51 // loop_header
                %s704 = sphi 0, %s708
                %p705 = scmp.ge.s32.totalorder %s704, 1
                %s709 = sphi %s691, %s691
                %s710 = sphi %s698, %s698
              $region55: #{cnn1_forward.1} parent=51 // loop_header_branch
                %707 = sbr.rel (%p705) target = $region59
              $region56: #{cnn1_forward.1} parent=51 // loop_body
                %v711 = vld [vmem:[%s709] sm:$0xff]
                %712 = vst [vmem:[%s710] sm:$0xff] %v711
                %v713 = vld [vmem:[%s709 + $0x8] sm:$0xff]
                %714 = vst [vmem:[%s710 + $0x8] sm:$0xff] %v713
                %v715 = vld [vmem:[%s709 + $0x10] sm:$0xff]
                %716 = vst [vmem:[%s710 + $0x10] sm:$0xff] %v715
                %v717 = vld [vmem:[%s709 + $0x18] sm:$0xff]
                %718 = vst [vmem:[%s710 + $0x18] sm:$0xff] %v717
                %v719 = vld [vmem:[%s709 + $0x20] sm:$0xff]
                %720 = vst [vmem:[%s710 + $0x20] sm:$0xff] %v719
                %v721 = vld [vmem:[%s709 + $0x28] sm:$0xff]
                %722 = vst [vmem:[%s710 + $0x28] sm:$0xff] %v721
                %v723 = vld [vmem:[%s709 + $0x30] sm:$0xff]
                %724 = vst [vmem:[%s710 + $0x30] sm:$0xff] %v723
                %v725 = vld [vmem:[%s709 + $0x38] sm:$0xff]
                %726 = vst [vmem:[%s710 + $0x38] sm:$0xff] %v725
                %v727 = vld [vmem:[%s709 + $0x40] sm:$0xff]
                %728 = vst [vmem:[%s710 + $0x80] sm:$0xff] %v727
                %v729 = vld [vmem:[%s709 + $0x48] sm:$0xff]
                %730 = vst [vmem:[%s710 + $0x88] sm:$0xff] %v729
                %v731 = vld [vmem:[%s709 + $0x50] sm:$0xff]
                %732 = vst [vmem:[%s710 + $0x90] sm:$0xff] %v731
                %v733 = vld [vmem:[%s709 + $0x58] sm:$0xff]
                %734 = vst [vmem:[%s710 + $0x98] sm:$0xff] %v733
                %v735 = vld [vmem:[%s709 + $0x60] sm:$0xff]
                %736 = vst [vmem:[%s710 + $0xa0] sm:$0xff] %v735
                %v737 = vld [vmem:[%s709 + $0x68] sm:$0xff]
                %738 = vst [vmem:[%s710 + $0xa8] sm:$0xff] %v737
                %v739 = vld [vmem:[%s709 + $0x70] sm:$0xff]
                %740 = vst [vmem:[%s710 + $0xb0] sm:$0xff] %v739
                %v741 = vld [vmem:[%s709 + $0x78] sm:$0xff]
                %742 = vst [vmem:[%s710 + $0xb8] sm:$0xff] %v741
              $region57: #{cnn1_forward.1} parent=51 // loop_footer
                %s708 = sadd.s32 1, %s704
              $region58: #{cnn1_forward.1} parent=51 // loop_footer_branch
                %703 = sbr.rel target = $region54
              $region59: #{cnn1_forward.1} parent=51 // loop_exit
                _
            $region52: #{cnn1_forward.1} parent=47 // pred_fallthru
              _
            // Predicated region
            $region60: #{cnn1_forward.1} parent=47 // pred_check
              _
            $region61: #{cnn1_forward.1} parent=47 // pred_check_branch
              %744 = sbr.rel target = $region63
            $region62: #{cnn1_forward.1} parent=47 // pred_region
              _
            $region63: #{cnn1_forward.1} parent=47 // pred_fallthru
              _
          $region48: #{cnn1_forward.1} parent=43 // pred_fallthru
            _
          %745 = vnop
        $region44: #{cnn1_forward.1} parent=39 // pred_fallthru
          _
      $region40: #{cnn1_forward.1} parent=5 // pred_fallthru
        _
      %p746 = scmp.le.s32.totalorder 2, %s11
      // Predicated region
      $region64: #{cnn1_forward.1} parent=5 // pred_check
        %p747 = pneg %p746
      $region65: #{cnn1_forward.1} parent=5 // pred_check_branch
        %749 = sbr.rel (%p747) target = $region67
      $region66: #{cnn1_forward.1} parent=5 // pred_region
        %s750 = ssub.s32 %s11, 2
        // Predicated region
        $region68: #{cnn1_forward.1} parent=66 // pred_check
          %p751 = pneg %p155
        $region69: #{cnn1_forward.1} parent=66 // pred_check_branch
          %753 = sbr.rel (%p751) target = $region71
        $region70: #{cnn1_forward.1} parent=66 // pred_region
          %s754 = sand.u32 %s140, 1
          %s755 = sand.u32 %s140, 1
          %s756 = smul.addr %s755, 128
          %s757 = scalar_lea.vmem [#allocation2], %s756
        $region71: #{cnn1_forward.1} parent=66 // pred_fallthru
          _
      $region67: #{cnn1_forward.1} parent=5 // pred_fallthru
        _
    $region6: #{cnn1_forward.1} parent=1 // loop_footer
      %s15 = sadd.s32 1, %s11
    $region7: #{cnn1_forward.1} parent=1 // loop_footer_branch
      %10 = sbr.rel target = $region3
    $region8: #{cnn1_forward.1} parent=1 // loop_exit
      _

</llo_original>
